<compile_context>
chip_gen: v7x
topology: tpu7x:2x2x1
jax: 0.10.0
libtpu: 0.0.40
codegen_flags: <defaults>
</compile_context>

<pallas_src>
import functools

import jax
import jax.numpy as jnp
from jax import lax
from jax.experimental import pallas as pl
from jax.experimental.pallas import tpu as pltpu


def _multilora_kernel(perm_ref, ids_ref, x_ref, b_ref, a_ref, o_ref):
    # x_ref: [1, TN, Din], b_ref: [1, rank, Din], a_ref: [1, rank, Dout] (scaling folded),
    # o_ref: [1, TN, Dout]. perm_ref/ids_ref are scalar-prefetch SMEM refs (index_map only).
    x = x_ref[0]        # [TN, Din]
    Bm = b_ref[0]       # [rank, Din]   lane-dense: Din on lanes
    At = a_ref[0]       # [rank, Dout]  lane-dense: Dout on lanes

    # bx[n, r] = sum_i x[n, i] * B[r, i]; keep the rank-dim intermediate in f32
    # (tiny [TN, rank] slab) to match the reference's f32 accumulation.
    bx = lax.dot_general(x, Bm, (((1,), (1,)), ((), ())),
                         preferred_element_type=jnp.float32)          # [TN, rank] f32

    # out[n, o] = sum_r bx[n, r] * A_t[r, o]; upcast of At is r*Dout elements (tiny).
    out = lax.dot_general(bx, At.astype(jnp.float32), (((1,), (0,)), ((), ())),
                          preferred_element_type=jnp.float32)         # [TN, Dout] f32

    # Epilogue = single cast (scaling already folded into At at prep time).
    o_ref[0] = out.astype(o_ref.dtype)


def _vmem_info():
    """(scoped limit, physical capacity). Fallback assumes 128 MiB (v5e/v6e) so a failed
    query doesn't silently halve the budget on big-VMEM generations."""
    phys = 128 << 20
    try:
        info = pltpu.get_tpu_info()
        phys = int(getattr(info, "vmem_capacity_bytes", phys))
    except Exception:
        pass
    limit = int(min(3 * phys // 4, 96 << 20))   # ~48 MiB on v7x, ~96 MiB on v5e/v6e
    return limit, phys


def _choose_seq_tile(seq, din, dout, r, itemsize, vmem_limit, physical_vmem):
    """Largest seq tile (multiple of the sublane quantum) whose streaming buffers fit the
    budget; prefers a divisor of seq, otherwise the wrapper pads seq up to a multiple."""
    sub = max(8, 32 // itemsize)                          # 8 rows for f32, 16 for bf16
    # Double-buffered x row + out row in streaming dtype, plus the in-kernel f32
    # matmul result row (scaling folded away -> no second f32 temp).
    row_bytes = 2 * (din + dout) * itemsize + 4 * dout
    # Weight double-buffers (B + A_t, 2 adapters deep) come off the top of the budget.
    weight_bytes = 4 * r * (din + dout) * itemsize
    # Small-VMEM parts (v7x: 64 MiB) get a ~37% target; 128 MiB parts keep 50%.
    num, den = (3, 8) if physical_vmem <= (64 << 20) else (1, 2)
    budget = max(vmem_limit * num // den - weight_bytes, row_bytes * sub)
    target = max(sub, budget // max(row_bytes, 1))
    target = min(target, 1024, max(seq, sub))             # 512-1024 rows already saturate HBM
    t = max((target // sub) * sub, sub)
    # Prefer a tile that divides seq (no padding DMA); otherwise keep t and pad.
    tt = t
    while tt >= sub:
        if seq % tt == 0:
            return tt
        tt -= sub
    return t


def prepare_multilora_params(A_param, B_param, *, alpha, rank, dtype=jnp.bfloat16):
    """One-time (load-time) weight prep: lane-dense A [n_adapters, rank, Dout] with
    alpha/rank folded in, plus dtype cast of both banks. Do NOT call per forward."""
    scaling = alpha / rank
    A_t = (jnp.swapaxes(A_param, 1, 2) * scaling).astype(dtype)   # [n_adapters, rank, Dout]
    B_p = B_param.astype(dtype)                                   # [n_adapters, rank, Din]
    return A_t, B_p


def multilora_forward(x, A_t, B_p, adapter_ids, *, out_dtype=None, seq_tile=None):
    """x: [B, N, Din]; A_t: [n_adapters, rank, Dout] (prepped, scaling folded);
    B_p: [n_adapters, rank, Din] (prepped); adapter_ids: int32 [B]. Returns [B, N, Dout]."""
    batch, seq, din = x.shape
    n_adapters, r, dout = A_t.shape
    assert B_p.shape == (n_adapters, r, din)

    compute_dtype = A_t.dtype
    if out_dtype is None:
        out_dtype = compute_dtype
    # Match MXU operand dtypes. In production, stream x in the prep dtype (bf16) to
    # avoid this cast and halve HBM traffic.
    if x.dtype != compute_dtype:
        x = x.astype(compute_dtype)

    itemsize = jnp.dtype(compute_dtype).itemsize
    vmem_limit, phys_vmem = _vmem_info()
    tn = seq_tile if seq_tile is not None else _choose_seq_tile(
        seq, din, dout, r, itemsize, vmem_limit, phys_vmem)

    # Pad seq to a multiple of the tile (padded output rows are sliced away).
    seq_p = ((seq + tn - 1) // tn) * tn
    if seq_p != seq:
        x = jnp.pad(x, ((0, 0), (0, seq_p - seq), (0, 0)))
    num_seq_tiles = seq_p // tn

    # Clamp ids (BlockSpec indices have no runtime bounds check) and group batch rows by
    # adapter via a permutation used only inside the index_maps (no data movement), so
    # consecutive batches sharing an adapter reuse the resident weight block.
    # TODO(synk): out-of-range ids are clamped silently; PyTorch indexing would raise.
    ids = jnp.clip(adapter_ids.astype(jnp.int32), 0, n_adapters - 1)
    perm = jnp.argsort(ids).astype(jnp.int32)
    sorted_ids = ids[perm]

    grid_spec = pltpu.PrefetchScalarGridSpec(
        num_scalar_prefetch=2,
        grid=(batch, num_seq_tiles),  # batch OUTER: weight block index constant over inner seq tiles
        in_specs=[
            pl.BlockSpec((1, tn, din), lambda b, s, perm, ids: (perm[b], s, 0)),   # x[perm[b]]
            pl.BlockSpec((1, r, din), lambda b, s, perm, ids: (ids[b], 0, 0)),     # B[adapter]
            pl.BlockSpec((1, r, dout), lambda b, s, perm, ids: (ids[b], 0, 0)),    # A_t[adapter]
        ],
        out_specs=pl.BlockSpec((1, tn, dout), lambda b, s, perm, ids: (perm[b], s, 0)),
    )

    # Independent iterations along batch; keep the 2-TC split on the batch axis so each
    # core's contiguous adapter runs (weight-DMA skip) stay intact.
    seq_sem = "parallel" if batch == 1 else "arbitrary"

    flops = 2 * batch * seq_p * r * (din + dout)
    bytes_accessed = (batch * seq_p * din + batch * seq_p * dout) * itemsize \
        + batch * r * (din + dout) * itemsize
    cost = pl.CostEstimate(flops=flops, transcendentals=0, bytes_accessed=bytes_accessed)

    out = pl.pallas_call(
        _multilora_kernel,
        out_shape=jax.ShapeDtypeStruct((batch, seq_p, dout), out_dtype),
        grid_spec=grid_spec,
        compiler_params=pltpu.CompilerParams(
            dimension_semantics=("parallel", seq_sem),
            vmem_limit_bytes=vmem_limit,
        ),
        cost_estimate=cost,
    )(perm, sorted_ids, x, B_p, A_t)

    if seq_p != seq:
        out = out[:, :seq, :]
    return out


def _reference(x, A_param, B_param, adapter_ids, *, alpha, rank):
    # Pure-JAX reference replicating the PyTorch einsum + advanced-index path.
    scaling = alpha / rank
    bx = jnp.einsum("bni,ari->bnar", x, B_param)
    res = jnp.einsum("bnar,aor->bnao", bx, A_param)
    sel = res[jnp.arange(x.shape[0]), :, adapter_ids, ...]   # [B, N, Dout]
    return sel * scaling


if __name__ == "__main__":
    # Small shapes consistent with the module's forward.
    batch, seq = 4, 16
    in_features, out_features = 32, 32
    rank, alpha, n_adapters = 8, 1.0, 3

    key = jax.random.PRNGKey(0)
    kx, ka, kb, kx3 = jax.random.split(key, 4)

    x = jax.random.normal(kx, (batch, seq, in_features), dtype=jnp.float32)

    # Module init: A = randn * 0.02, B = zeros.
    A_param = 0.02 * jax.random.normal(ka, (n_adapters, out_features, rank), dtype=jnp.float32)
    B_param = jnp.zeros((n_adapters, rank, in_features), dtype=jnp.float32)
    # Repeated + unsorted adapter ids to exercise the grouping permutation path.
    adapter_ids = jnp.array([2, 0, 2, 1], dtype=jnp.int32)

    # --- f32 path, module init (B = 0) -------------------------------------------------
    A_t32, B_p32 = prepare_multilora_params(A_param, B_param, alpha=alpha, rank=rank,
                                            dtype=jnp.float32)
    out = multilora_forward(x, A_t32, B_p32, adapter_ids)
    out = jax.block_until_ready(out)
    ref = _reference(x, A_param, B_param, adapter_ids, alpha=alpha, rank=rank)
    assert out.shape == ref.shape
    assert jnp.allclose(out, ref, atol=1e-5), "mismatch (module init)"

    # --- f32 path, random B, forced multi-tile seq -------------------------------------
    B_rand = 0.02 * jax.random.normal(kb, (n_adapters, rank, in_features), dtype=jnp.float32)
    A_t32r, B_p32r = prepare_multilora_params(A_param, B_rand, alpha=alpha, rank=rank,
                                              dtype=jnp.float32)
    out2 = multilora_forward(x, A_t32r, B_p32r, adapter_ids, seq_tile=8)
    out2 = jax.block_until_ready(out2)
    ref2 = _reference(x, A_param, B_rand, adapter_ids, alpha=alpha, rank=rank)
    assert jnp.allclose(out2, ref2, atol=1e-5), "mismatch (random B, tiled seq)"

    # --- bf16 streaming path, non-divisible seq (exercises padding + cast) -------------
    x3 = jax.random.normal(kx3, (batch, 24, in_features), dtype=jnp.float32)
    A_tbf, B_pbf = prepare_multilora_params(A_param, B_rand, alpha=alpha, rank=rank,
                                            dtype=jnp.bfloat16)
    out3 = multilora_forward(x3, A_tbf, B_pbf, adapter_ids, seq_tile=16,
                             out_dtype=jnp.float32)
    out3 = jax.block_until_ready(out3)
    ref3 = _reference(x3, A_param, B_rand, adapter_ids, alpha=alpha, rank=rank)
    assert out3.shape == ref3.shape
    assert jnp.allclose(out3, ref3, atol=1e-3), "mismatch (bf16 streaming, padded seq)"

    print("KERNEL_OK")
</pallas_src>

<mosaic_0001>
module attributes {stable_mosaic.version = 11 : i64} {
  func.func @_multilora_kernel(%arg0: i32, %arg1: i32, %arg2: memref<4xi32, #tpu.memory_space<smem>>, %arg3: memref<4xi32, #tpu.memory_space<smem>>, %arg4: memref<1x16x32xf32, #tpu.memory_space<vmem>>, %arg5: memref<1x8x32xf32, #tpu.memory_space<vmem>>, %arg6: memref<1x8x32xf32, #tpu.memory_space<vmem>>, %arg7: memref<1x16x32xf32, #tpu.memory_space<vmem>>) attributes {dimension_semantics = [#tpu.dimension_semantics<parallel>, #tpu.dimension_semantics<arbitrary>], iteration_bounds = array<i64: 4, 1>, scalar_prefetch = 2 : i64, scratch_operands = 0 : i64, tpu.core_type = #tpu.core_type<tc>, window_params = [{transform_indices = @transform_0, window_bounds = array<i64: 1, 16, 32>}, {transform_indices = @transform_1, window_bounds = array<i64: 1, 8, 32>}, {transform_indices = @transform_2, window_bounds = array<i64: 1, 8, 32>}, {transform_indices = @transform_3, window_bounds = array<i64: 1, 16, 32>}]} {
    %c0 = arith.constant 0 : index
    %c0_0 = arith.constant 0 : index
    %c0_1 = arith.constant 0 : index
    %0 = vector.load %arg4[%c0, %c0_0, %c0_1] : memref<1x16x32xf32, #tpu.memory_space<vmem>>, vector<1x16x32xf32>
    %1 = vector.shape_cast %0 : vector<1x16x32xf32> to vector<16x32xf32>
    %c0_2 = arith.constant 0 : index
    %c0_3 = arith.constant 0 : index
    %c0_4 = arith.constant 0 : index
    %2 = vector.load %arg5[%c0_2, %c0_3, %c0_4] : memref<1x8x32xf32, #tpu.memory_space<vmem>>, vector<1x8x32xf32>
    %3 = vector.shape_cast %2 : vector<1x8x32xf32> to vector<8x32xf32>
    %c0_5 = arith.constant 0 : index
    %c0_6 = arith.constant 0 : index
    %c0_7 = arith.constant 0 : index
    %4 = vector.load %arg6[%c0_5, %c0_6, %c0_7] : memref<1x8x32xf32, #tpu.memory_space<vmem>>, vector<1x8x32xf32>
    %5 = vector.shape_cast %4 : vector<1x8x32xf32> to vector<8x32xf32>
    %cst = arith.constant dense<0.000000e+00> : vector<16x8xf32>
    %6 = tpu.matmul %1, %3, %cst {dimension_numbers = #tpu.dot_dimension_numbers<[1], [1], [0], [0], [0, 0, 1, 0], [], []>} : vector<16x32xf32>, vector<8x32xf32>, vector<16x8xf32> -> vector<16x8xf32>
    %cst_8 = arith.constant dense<0.000000e+00> : vector<16x32xf32>
    %7 = tpu.matmul %6, %5, %cst_8 {dimension_numbers = #tpu.dot_dimension_numbers<[1], [0], [0], [1], [0, 0, 1, 1], [], []>} : vector<16x8xf32>, vector<8x32xf32>, vector<16x32xf32> -> vector<16x32xf32>
    %c0_9 = arith.constant 0 : index
    %c0_10 = arith.constant 0 : index
    %c0_11 = arith.constant 0 : index
    %8 = vector.load %arg7[%c0_9, %c0_10, %c0_11] : memref<1x16x32xf32, #tpu.memory_space<vmem>>, vector<1x16x32xf32>
    %9 = vector.shape_cast %8 : vector<1x16x32xf32> to vector<16x32xf32>
    %10 = vector.shape_cast %7 : vector<16x32xf32> to vector<1x16x32xf32>
    tpu.vector_store %arg7[%c0_9, %c0_10, %c0_11], %10 {strides = array<i32>} : memref<1x16x32xf32, #tpu.memory_space<vmem>>, vector<1x16x32xf32>,
    return
  }
  func.func @transform_0(%arg0: i32, %arg1: i32, %arg2: memref<4xi32, #tpu.memory_space<smem>>, %arg3: memref<4xi32, #tpu.memory_space<smem>>) -> (i32, i32, i32) {
    %0 = arith.index_cast %arg0 : i32 to index
    %1 = memref.load %arg2[%0] : memref<4xi32, #tpu.memory_space<smem>>
    %c0_i32 = arith.constant 0 : i32
    %c0_i32_0 = arith.constant 0 : i32
    return %1, %arg1, %c0_i32 : i32, i32, i32
  }
  func.func @transform_1(%arg0: i32, %arg1: i32, %arg2: memref<4xi32, #tpu.memory_space<smem>>, %arg3: memref<4xi32, #tpu.memory_space<smem>>) -> (i32, i32, i32) {
    %0 = arith.index_cast %arg0 : i32 to index
    %1 = memref.load %arg3[%0] : memref<4xi32, #tpu.memory_space<smem>>
    %c0_i32 = arith.constant 0 : i32
    %c0_i32_0 = arith.constant 0 : i32
    %c0_i32_1 = arith.constant 0 : i32
    return %1, %c0_i32, %c0_i32_0 : i32, i32, i32
  }
  func.func @transform_2(%arg0: i32, %arg1: i32, %arg2: memref<4xi32, #tpu.memory_space<smem>>, %arg3: memref<4xi32, #tpu.memory_space<smem>>) -> (i32, i32, i32) {
    %0 = arith.index_cast %arg0 : i32 to index
    %1 = memref.load %arg3[%0] : memref<4xi32, #tpu.memory_space<smem>>
    %c0_i32 = arith.constant 0 : i32
    %c0_i32_0 = arith.constant 0 : i32
    %c0_i32_1 = arith.constant 0 : i32
    return %1, %c0_i32, %c0_i32_0 : i32, i32, i32
  }
  func.func @transform_3(%arg0: i32, %arg1: i32, %arg2: memref<4xi32, #tpu.memory_space<smem>>, %arg3: memref<4xi32, #tpu.memory_space<smem>>) -> (i32, i32, i32) {
    %0 = arith.index_cast %arg0 : i32 to index
    %1 = memref.load %arg2[%0] : memref<4xi32, #tpu.memory_space<smem>>
    %c0_i32 = arith.constant 0 : i32
    %c0_i32_0 = arith.constant 0 : i32
    return %1, %arg1, %c0_i32 : i32, i32, i32
  }
}

</mosaic_0001>

<llo_original>
// kernel: tpu_custom_call.1
$region0: #{tpu_custom_call.1}
  #allocation0 [shape = 'u32[]', space=smem, size = 0x4, offset = 0x4, fixed_abs, tag = 'smem constant byte address 0x4 - core index']
  #allocation1 [shape = 'u32[144,128]{1,0:T(1,128)}', space=vmem, size = 0x12000, scoped, tag = 'internal scratch']
  #allocation2 [shape = 's32[1]{0}', space=sflag, size = 0x4, scoped, tag = 'scoped memory for tpu_custom_call.1']
  #allocation3 [shape = 'u8[512]{0}', space=smem, size = 0x200, scoped, tag = 'prefetched SMEM operand 0']
  #allocation4 [shape = 'u8[512]{0}', space=smem, size = 0x200, scoped, tag = 'prefetched SMEM operand 1']
  %s0 = inlined_call_operand.hbm [shape: s32[4], index: 0, kind: input, shape index: {}]
  %s1 = inlined_call_operand.hbm [shape: s32[4], index: 1, kind: input, shape index: {}]
  %s2 = inlined_call_operand.hbm [shape: f32[4,16,32], index: 2, kind: input, shape index: {}]
  %s3 = inlined_call_operand.hbm [shape: f32[3,8,32], index: 3, kind: input, shape index: {}]
  %s4 = inlined_call_operand.hbm [shape: f32[3,8,32], index: 4, kind: input, shape index: {}]
  %s5 = inlined_call_operand.hbm [shape: f32[4,16,32], index: 5, kind: output, shape index: {}]
  %s6 = sld [smem:[#allocation0]]
  $region57: #{tpu_custom_call.1} parent=0
    _
  %s8 = ssub.s32 1, %s6
  %s9 = scalar_select 0, %s8, %s6
  %11 = dma.hbm_to_smem %s0, 16, [#allocation3], [#allocation2]
  %13 = dma.hbm_to_smem %s1, 16, [#allocation4], [#allocation2]
  %14 = dma.done [#allocation2], 32
  %15 = sfence
  $region1: #{tpu_custom_call.1} parent=0
    #allocation5 [shape = 'u8[16384]{0}', space=vmem, size = 0x4000, scoped, tag = 'input window, operand 2']
    #allocation6 [shape = 's32[2]{0}', space=sflag, size = 0x8, scoped, tag = 'scoped memory for tpu_custom_call.1']
    #allocation7 [shape = 's32[2]{0}', space=sflag, size = 0x8, scoped, tag = 'scoped memory for tpu_custom_call.1']
    #allocation8 [shape = 'u8[8192]{0}', space=vmem, size = 0x2000, scoped, tag = 'input window, operand 3']
    #allocation9 [shape = 's32[2]{0}', space=sflag, size = 0x8, scoped, tag = 'scoped memory for tpu_custom_call.1']
    #allocation10 [shape = 'u8[8192]{0}', space=vmem, size = 0x2000, scoped, tag = 'input window, operand 4']
    #allocation11 [shape = 'u8[16384]{0}', space=vmem, size = 0x4000, scoped, tag = 'output window, operand 0']
    %16 = vsyncpa [#allocation6], 0
    %s17 = scalar_lea.sflag [#allocation6], 1
    %18 = vsyncpa %s17, 0
    %19 = vsyncpa [#allocation9], 0
    %s20 = scalar_lea.sflag [#allocation9], 1
    %21 = vsyncpa %s20, 0
    %22 = vsyncpa [#allocation7], 0
    %s23 = scalar_lea.sflag [#allocation7], 1
    %24 = vsyncpa %s23, 0
    loop: start=0, step=1, limit=6
    $region2: #{tpu_custom_call.1} parent=1 // loop_pre_header
      _
    $region3: #{tpu_custom_call.1} parent=1 // loop_header
      %s26 = sphi 0, %s30
      %p27 = scmp.ge.s32.totalorder %s26, 6
      %s33 = sphi 0, %s45
      %s34 = sphi 0, %s41
      %s35 = sphi 0, %s33
      %s36 = sphi 0, %s34
      %s37 = sphi 0, %s35
      %s38 = sphi 0, %s36
      %s52 = sphi 0, %s54
      %s55 = sphi 0, %s52
      %s56 = sphi 0, %s55
      %s72 = sphi 0, %s56
      %s80 = sphi 0, %s82
      %s83 = sphi 0, %s80
      %s84 = sphi 0, %s83
      %s100 = sphi 0, %s84
      %s108 = sphi 0, %s110
      %s111 = sphi 0, %s108
      %s112 = sphi 0, %s111
      %s128 = sphi 0, %s112
      %s138 = sphi 0, %s140
      %s141 = sphi 0, %s138
      %s142 = sphi 0, %s141
      %s158 = sphi 0, %s142
    $region4: #{tpu_custom_call.1} parent=1 // loop_header_branch
      %29 = sbr.rel (%p27) target = $region8
    $region5: #{tpu_custom_call.1} parent=1 // loop_body
      %s31 = ssub.s32 %s26, 1
      %s32 = ssub.s32 %s26, 2
      %s39 = sadd.s32 1, %s34
      %p40 = scmp.ge.s32.totalorder %s39, 1
      %s41 = scalar_select %p40, 0, %s39
      %s42 = sadd.s32 1, %s33
      %s43 = scalar_select %p40, %s42, %s33
      %p44 = scmp.ge.s32.totalorder %s43, 4
      %s45 = scalar_select %p44, 0, %s43
      %s46 = sld [smem:[#allocation3 + %s33]]
      %s47 = sld [smem:[#allocation3 + %s45]]
      %s48 = ssub.s32 %s46, %s47
      %s49 = ssub.s32 %s34, %s41
      %s50 = sor.u32 %s48, %s49
      %p51 = scmp.eq.s32.totalorder %s50, 0
      %s53 = sadd.s32 %s52, 1
      %s54 = scalar_select %p51, %s52, %s53
      %p57 = pneg %p51
      %p58 = scmp.eq.s32.totalorder %s26, 3
      %p59 = por %p57, %p58
      %p60 = scmp.ne.s32.totalorder %s52, %s55
      %p61 = scmp.eq.s32.totalorder %s26, 0
      %p62 = por %p60, %p61
      %p63 = scmp.ne.s32.totalorder %s52, %s55
      %p64 = scmp.eq.s32.totalorder %s31, 3
      %p65 = por %p63, %p64
      %p66 = scmp.ne.s32.totalorder %s55, %s56
      %p67 = scmp.eq.s32.totalorder %s31, 0
      %p68 = por %p66, %p67
      %p69 = scmp.ne.s32.totalorder %s55, %s56
      %p70 = scmp.eq.s32.totalorder %s32, 3
      %p71 = por %p69, %p70
      %p73 = scmp.ne.s32.totalorder %s56, %s72
      %p74 = scmp.eq.s32.totalorder %s32, 0
      %p75 = por %p73, %p74
      %s76 = sld [smem:[#allocation4 + %s33]]
      %s77 = sld [smem:[#allocation4 + %s45]]
      %s78 = ssub.s32 %s76, %s77
      %p79 = scmp.eq.s32.totalorder %s78, 0
      %s81 = sadd.s32 %s80, 1
      %s82 = scalar_select %p79, %s80, %s81
      %p85 = pneg %p79
      %p86 = scmp.eq.s32.totalorder %s26, 3
      %p87 = por %p85, %p86
      %p88 = scmp.ne.s32.totalorder %s80, %s83
      %p89 = scmp.eq.s32.totalorder %s26, 0
      %p90 = por %p88, %p89
      %p91 = scmp.ne.s32.totalorder %s80, %s83
      %p92 = scmp.eq.s32.totalorder %s31, 3
      %p93 = por %p91, %p92
      %p94 = scmp.ne.s32.totalorder %s83, %s84
      %p95 = scmp.eq.s32.totalorder %s31, 0
      %p96 = por %p94, %p95
      %p97 = scmp.ne.s32.totalorder %s83, %s84
      %p98 = scmp.eq.s32.totalorder %s32, 3
      %p99 = por %p97, %p98
      %p101 = scmp.ne.s32.totalorder %s84, %s100
      %p102 = scmp.eq.s32.totalorder %s32, 0
      %p103 = por %p101, %p102
      %s104 = sld [smem:[#allocation4 + %s33]]
      %s105 = sld [smem:[#allocation4 + %s45]]
      %s106 = ssub.s32 %s104, %s105
      %p107 = scmp.eq.s32.totalorder %s106, 0
      %s109 = sadd.s32 %s108, 1
      %s110 = scalar_select %p107, %s108, %s109
      %p113 = pneg %p107
      %p114 = scmp.eq.s32.totalorder %s26, 3
      %p115 = por %p113, %p114
      %p116 = scmp.ne.s32.totalorder %s108, %s111
      %p117 = scmp.eq.s32.totalorder %s26, 0
      %p118 = por %p116, %p117
      %p119 = scmp.ne.s32.totalorder %s108, %s111
      %p120 = scmp.eq.s32.totalorder %s31, 3
      %p121 = por %p119, %p120
      %p122 = scmp.ne.s32.totalorder %s111, %s112
      %p123 = scmp.eq.s32.totalorder %s31, 0
      %p124 = por %p122, %p123
      %p125 = scmp.ne.s32.totalorder %s111, %s112
      %p126 = scmp.eq.s32.totalorder %s32, 3
      %p127 = por %p125, %p126
      %p129 = scmp.ne.s32.totalorder %s112, %s128
      %p130 = scmp.eq.s32.totalorder %s32, 0
      %p131 = por %p129, %p130
      %s132 = sld [smem:[#allocation3 + %s33]]
      %s133 = sld [smem:[#allocation3 + %s45]]
      %s134 = ssub.s32 %s132, %s133
      %s135 = ssub.s32 %s34, %s41
      %s136 = sor.u32 %s134, %s135
      %p137 = scmp.eq.s32.totalorder %s136, 0
      %s139 = sadd.s32 %s138, 1
      %s140 = scalar_select %p137, %s138, %s139
      %p143 = pneg %p137
      %p144 = scmp.eq.s32.totalorder %s26, 3
      %p145 = por %p143, %p144
      %p146 = scmp.ne.s32.totalorder %s138, %s141
      %p147 = scmp.eq.s32.totalorder %s26, 0
      %p148 = por %p146, %p147
      %p149 = scmp.ne.s32.totalorder %s138, %s141
      %p150 = scmp.eq.s32.totalorder %s31, 3
      %p151 = por %p149, %p150
      %p152 = scmp.ne.s32.totalorder %s141, %s142
      %p153 = scmp.eq.s32.totalorder %s31, 0
      %p154 = por %p152, %p153
      %p155 = scmp.ne.s32.totalorder %s141, %s142
      %p156 = scmp.eq.s32.totalorder %s32, 3
      %p157 = por %p155, %p156
      %p159 = scmp.ne.s32.totalorder %s142, %s158
      %p160 = scmp.eq.s32.totalorder %s32, 0
      %p161 = por %p159, %p160
      %p162 = scmp.le.s32.totalorder 1, %s26
      %p163 = scmp.lt.s32.totalorder %s26, 5
      %p164 = pnand %p162, %p163
      %p165 = pneg %p164
      // Predicated region
      $region9: #{tpu_custom_call.1} parent=5 // pred_check
        _
      $region10: #{tpu_custom_call.1} parent=5 // pred_check_branch
        %167 = sbr.rel (%p164) target = $region12
      $region11: #{tpu_custom_call.1} parent=5 // pred_region
        %s168 = ssub.s32 %s26, 1
      $region12: #{tpu_custom_call.1} parent=5 // pred_fallthru
        _
      %p169 = scmp.lt.s32.totalorder %s26, 4
      // Predicated region
      $region13: #{tpu_custom_call.1} parent=5 // pred_check
        %p170 = pneg %p169
      $region14: #{tpu_custom_call.1} parent=5 // pred_check_branch
        %172 = sbr.rel (%p170) target = $region16
      $region15: #{tpu_custom_call.1} parent=5 // pred_region
        // Predicated region
        $region17: #{tpu_custom_call.1} parent=15 // pred_check
          %p173 = pneg %p62
        $region18: #{tpu_custom_call.1} parent=15 // pred_check_branch
          %175 = sbr.rel (%p173) target = $region20
        $region19: #{tpu_custom_call.1} parent=15 // pred_region
          %s176 = sand.u32 %s52, 1
          %s177 = scalar_lea.sflag [#allocation6], %s176
          %s178 = sand.u32 %s52, 1
          %s179 = smul.addr %s178, 16
          %s180 = scalar_lea.vmem [#allocation5], %s179
          %s181 = sld [smem:[#allocation3 + %s33]]
          %s182 = smul.u32 2, %s34
          %s184 = ssub.s32 256, 256
          %185 = vsyncadd %s177, %s184
          %s186 = smul.addr %s181, 2
          %s187 = sadd.s32 %s182, %s186
          %s188 = smul.addr %s187, 128
          %s189 = scalar_lea.hbm %s2, %s188
          %s190 = sshll.u32 %s180, 4
          %s191 = int_to_ptr.vmem [resolvable:$true] %s190
          %196 = dma.hbm_to_vmem [thread:$0]  %s189, 256, %s191, %s177, 128, 128, 8
        $region20: #{tpu_custom_call.1} parent=15 // pred_fallthru
          _
        // Predicated region
        $region21: #{tpu_custom_call.1} parent=15 // pred_check
          %p197 = pneg %p90
        $region22: #{tpu_custom_call.1} parent=15 // pred_check_branch
          %199 = sbr.rel (%p197) target = $region24
        $region23: #{tpu_custom_call.1} parent=15 // pred_region
          %s200 = sand.u32 %s26, 1
          %s201 = scalar_lea.sflag [#allocation9], %s200
          %s202 = sand.u32 %s80, 1
          %s203 = smul.addr %s202, 8
          %s204 = scalar_lea.vmem [#allocation8], %s203
          %s205 = sld [smem:[#allocation4 + %s33]]
          %s207 = ssub.s32 128, 128
          %208 = vsyncadd %s201, %s207
          %s209 = smul.addr %s205, 128
          %s210 = scalar_lea.hbm %s3, %s209
          %s212 = sshll.u32 %s204, 4
          %s213 = int_to_ptr.vmem [resolvable:$true] %s212
          %215 = dma.hbm_to_vmem [thread:$0]  %s210, 128, %s213, %s201
        $region24: #{tpu_custom_call.1} parent=15 // pred_fallthru
          _
        // Predicated region
        $region25: #{tpu_custom_call.1} parent=15 // pred_check
          %p216 = pneg %p118
        $region26: #{tpu_custom_call.1} parent=15 // pred_check_branch
          %218 = sbr.rel (%p216) target = $region28
        $region27: #{tpu_custom_call.1} parent=15 // pred_region
          %s219 = sand.u32 %s26, 1
          %s220 = scalar_lea.sflag [#allocation9], %s219
          %s221 = sand.u32 %s108, 1
          %s222 = smul.addr %s221, 8
          %s223 = scalar_lea.vmem [#allocation10], %s222
          %s224 = sld [smem:[#allocation4 + %s33]]
          %s226 = ssub.s32 128, 128
          %227 = vsyncadd %s220, %s226
          %s228 = smul.addr %s224, 128
          %s229 = scalar_lea.hbm %s4, %s228
          %s231 = sshll.u32 %s223, 4
          %s232 = int_to_ptr.vmem [resolvable:$true] %s231
          %234 = dma.hbm_to_vmem [thread:$0]  %s229, 128, %s232, %s220
        $region28: #{tpu_custom_call.1} parent=15 // pred_fallthru
          _
      $region16: #{tpu_custom_call.1} parent=5 // pred_fallthru
        _
      %p235 = scmp.le.s32.totalorder 1, %s26
      %p236 = scmp.lt.s32.totalorder %s26, 5
      %p237 = pnand %p235, %p236
      %p238 = pneg %p237
      // Predicated region
      $region29: #{tpu_custom_call.1} parent=5 // pred_check
        _
      $region30: #{tpu_custom_call.1} parent=5 // pred_check_branch
        %240 = sbr.rel (%p237) target = $region32
      $region31: #{tpu_custom_call.1} parent=5 // pred_region
        %s241 = ssub.s32 %s26, 1
        %s242 = sand.u32 %s55, 1
        %s243 = scalar_lea.sflag [#allocation6], %s242
        %s244 = sand.u32 %s55, 1
        %s245 = smul.addr %s244, 16
        %s246 = scalar_lea.vmem [#allocation5], %s245
        // Predicated region
        $region33: #{tpu_custom_call.1} parent=31 // pred_check
          %p247 = pneg %p68
        $region34: #{tpu_custom_call.1} parent=31 // pred_check_branch
          %249 = sbr.rel (%p247) target = $region36
        $region35: #{tpu_custom_call.1} parent=31 // pred_region
          %250 = dma.done %s243, 256
        $region36: #{tpu_custom_call.1} parent=31 // pred_fallthru
          _
        %s251 = sand.u32 %s31, 1
        %s252 = scalar_lea.sflag [#allocation9], %s251
        %s253 = sand.u32 %s83, 1
        %s254 = smul.addr %s253, 8
        %s255 = scalar_lea.vmem [#allocation8], %s254
        // Predicated region
        $region37: #{tpu_custom_call.1} parent=31 // pred_check
          %p256 = pneg %p96
        $region38: #{tpu_custom_call.1} parent=31 // pred_check_branch
          %258 = sbr.rel (%p256) target = $region40
        $region39: #{tpu_custom_call.1} parent=31 // pred_region
          %259 = dma.done %s252, 128
        $region40: #{tpu_custom_call.1} parent=31 // pred_fallthru
          _
        %s260 = sand.u32 %s31, 1
        %s261 = scalar_lea.sflag [#allocation9], %s260
        %s262 = sand.u32 %s111, 1
        %s263 = smul.addr %s262, 8
        %s264 = scalar_lea.vmem [#allocation10], %s263
        // Predicated region
        $region41: #{tpu_custom_call.1} parent=31 // pred_check
          %p265 = pneg %p124
        $region42: #{tpu_custom_call.1} parent=31 // pred_check_branch
          %267 = sbr.rel (%p265) target = $region44
        $region43: #{tpu_custom_call.1} parent=31 // pred_region
          %268 = dma.done %s261, 128
        $region44: #{tpu_custom_call.1} parent=31 // pred_fallthru
          _
        %s269 = sand.u32 %s55, 1
        %s270 = scalar_lea.sflag [#allocation6], %s269
        %s271 = sand.u32 %s55, 1
        %s272 = smul.addr %s271, 16
        %s273 = scalar_lea.vmem [#allocation5], %s272
        %p274 = pneg %p68
        %p275 = pneg %p65
        %s276 = sand.u32 %s31, 1
        %s277 = scalar_lea.sflag [#allocation9], %s276
        %s278 = sand.u32 %s83, 1
        %s279 = smul.addr %s278, 8
        %s280 = scalar_lea.vmem [#allocation8], %s279
        %p281 = pneg %p96
        %p282 = pneg %p93
        %s283 = sand.u32 %s31, 1
        %s284 = scalar_lea.sflag [#allocation9], %s283
        %s285 = sand.u32 %s111, 1
        %s286 = smul.addr %s285, 8
        %s287 = scalar_lea.vmem [#allocation10], %s286
        %p288 = pneg %p124
        %p289 = pneg %p121
        %p290 = pneg %p154
        %p291 = pneg %p151
        %s292 = sand.u32 %s141, 1
        %s293 = scalar_lea.sflag [#allocation7], %s292
        %s294 = sand.u32 %s141, 1
        %s295 = smul.addr %s294, 16
        %s296 = scalar_lea.vmem [#allocation11], %s295
        %s297 = sld [smem:[#allocation3 + %s35]]
        %s298 = smul.u32 2, %s36
        %s299 = sld [smem:[#allocation4 + %s35]]
        %s300 = sld [smem:[#allocation4 + %s35]]
        %s301 = sld [smem:[#allocation3 + %s35]]
        %s302 = smul.u32 2, %s36
        %v303 = vld [vmem:[%s246] sm:$0xff]
        %v304 = vld [vmem:[%s246 + $0x8] sm:$0xff]
        %v305 = vld [vmem:[%s255] sm:$0xff]
        %v306 = vld [vmem:[%s264] sm:$0xff]
        %vm307 = vcmask 261120
        %v309 = vsel %vm307, %v303, 0
        %v312 = vsel %vm307, %v304, 0
        %v315 = vsel %vm307, %v305, 0
        %317 = vmatprep.subr.mxu0 0.0
        %318 = vmatpush1.xpose.msra.mxu0 %v315
        %319 = vmatprep.subr.mxu0 0.0
        %320 = vmatpush1.xpose.msra.mxu0 0.0
        %321 = vmatprep.subr.mxu0 0.0
        %322 = vmatpush1.xpose.msra.mxu0 0.0
        %323 = vmatprep.subr.mxu0 0.0
        %324 = vmatpush1.xpose.msra.mxu0 0.0
        %325 = vmatprep.subr.mxu0 0.0
        %326 = vmatpush1.xpose.msra.mxu0 0.0
        %327 = vmatprep.subr.mxu0 0.0
        %328 = vmatpush1.xpose.msra.mxu0 0.0
        %329 = vmatprep.subr.mxu0 0.0
        %330 = vmatpush1.xpose.msra.mxu0 0.0
        %331 = vmatprep.subr.mxu0 0.0
        %332 = vmatpush1.xpose.msra.mxu0 0.0
        %333 = vmatprep.subr.mxu0 0.0
        %334 = vmatpush1.xpose.msra.mxu0 0.0
        %335 = vmatprep.subr.mxu0 0.0
        %336 = vmatpush1.xpose.msra.mxu0 0.0
        %337 = vmatprep.subr.mxu0 0.0
        %338 = vmatpush1.xpose.msra.mxu0 0.0
        %339 = vmatprep.subr.mxu0 0.0
        %340 = vmatpush1.xpose.msra.mxu0 0.0
        %341 = vmatprep.subr.mxu0 0.0
        %342 = vmatpush1.xpose.msra.mxu0 0.0
        %343 = vmatprep.subr.mxu0 0.0
        %344 = vmatpush1.xpose.msra.mxu0 0.0
        %345 = vmatprep.subr.mxu0 0.0
        %346 = vmatpush1.xpose.msra.mxu0 0.0
        %347 = vmatprep.subr.mxu0 0.0
        %348 = vmatpush1.xpose.msra.mxu0 0.0
        %349 = vmatprep.subr.mxu0 0.0
        %350 = vmatpush1.xpose.msra.mxu0 0.0
        %351 = vmatprep.subr.mxu0 0.0
        %352 = vmatpush1.xpose.msra.mxu0 0.0
        %353 = vmatprep.subr.mxu0 0.0
        %354 = vmatpush1.xpose.msra.mxu0 0.0
        %355 = vmatprep.subr.mxu0 0.0
        %356 = vmatpush1.xpose.msra.mxu0 0.0
        %357 = vmatprep.subr.mxu0 0.0
        %358 = vmatpush1.xpose.msra.mxu0 0.0
        %359 = vmatprep.subr.mxu0 0.0
        %360 = vmatpush1.xpose.msra.mxu0 0.0
        %361 = vmatprep.subr.mxu0 0.0
        %362 = vmatpush1.xpose.msra.mxu0 0.0
        %363 = vmatprep.subr.mxu0 0.0
        %364 = vmatpush1.xpose.msra.mxu0 0.0
        %365 = vmatprep.subr.mxu0 0.0
        %366 = vmatpush1.xpose.msra.mxu0 0.0
        %367 = vmatprep.subr.mxu0 0.0
        %368 = vmatpush1.xpose.msra.mxu0 0.0
        %369 = vmatprep.subr.mxu0 0.0
        %370 = vmatpush1.xpose.msra.mxu0 0.0
        %371 = vmatprep.subr.mxu0 0.0
        %372 = vmatpush1.xpose.msra.mxu0 0.0
        %373 = vmatprep.subr.mxu0 0.0
        %374 = vmatpush1.xpose.msra.mxu0 0.0
        %375 = vmatprep.subr.mxu0 0.0
        %376 = vmatpush1.xpose.msra.mxu0 0.0
        %377 = vmatprep.subr.mxu0 0.0
        %378 = vmatpush1.xpose.msra.mxu0 0.0
        %379 = vmatprep.subr.mxu0 0.0
        %380 = vmatpush1.xpose.msra.mxu0 0.0
        %381 = vmatprep.mubr.f32.mxu0 0.0
        %382 = vmatmul.mubr.f32.gmra.mrb[0].mxu0 %v309
        %v383 = vpop.f32.mrb[0].mxu0
        %v384 = vadd.f32 0.0, %v383
        %v385 = vpop.f32.mrb[0].mxu0
        %386 = vmatprep.mubr.f32.mxu0 0.0
        %387 = vmatmul.mubr.f32.gmra.mrb[0].mxu0 %v312
        %v388 = vpop.f32.mrb[0].mxu0
        %v389 = vadd.f32 0.0, %v388
        %v390 = vpop.f32.mrb[0].mxu0
        %391 = vdwg.mxu0
        %vm392 = vcmask 64512
        %v394 = vsel %vm392, %v384, 0
        %v397 = vsel %vm392, %v389, 0
        %399 = vmatprep.subr.mxu0 0.0
        %400 = vmatpush1.msra.mxu0 %v306
        %401 = vmatprep.subr.mxu0 0.0
        %402 = vmatpush1.msra.mxu0 0.0
        %403 = vmatprep.subr.mxu0 0.0
        %404 = vmatpush1.msra.mxu0 0.0
        %405 = vmatprep.subr.mxu0 0.0
        %406 = vmatpush1.msra.mxu0 0.0
        %407 = vmatprep.subr.mxu0 0.0
        %408 = vmatpush1.msra.mxu0 0.0
        %409 = vmatprep.subr.mxu0 0.0
        %410 = vmatpush1.msra.mxu0 0.0
        %411 = vmatprep.subr.mxu0 0.0
        %412 = vmatpush1.msra.mxu0 0.0
        %413 = vmatprep.subr.mxu0 0.0
        %414 = vmatpush1.msra.mxu0 0.0
        %415 = vmatprep.subr.mxu0 0.0
        %416 = vmatpush1.msra.mxu0 0.0
        %417 = vmatprep.subr.mxu0 0.0
        %418 = vmatpush1.msra.mxu0 0.0
        %419 = vmatprep.subr.mxu0 0.0
        %420 = vmatpush1.msra.mxu0 0.0
        %421 = vmatprep.subr.mxu0 0.0
        %422 = vmatpush1.msra.mxu0 0.0
        %423 = vmatprep.subr.mxu0 0.0
        %424 = vmatpush1.msra.mxu0 0.0
        %425 = vmatprep.subr.mxu0 0.0
        %426 = vmatpush1.msra.mxu0 0.0
        %427 = vmatprep.subr.mxu0 0.0
        %428 = vmatpush1.msra.mxu0 0.0
        %429 = vmatprep.subr.mxu0 0.0
        %430 = vmatpush1.msra.mxu0 0.0
        %431 = vmatprep.subr.mxu0 0.0
        %432 = vmatpush1.msra.mxu0 0.0
        %433 = vmatprep.subr.mxu0 0.0
        %434 = vmatpush1.msra.mxu0 0.0
        %435 = vmatprep.subr.mxu0 0.0
        %436 = vmatpush1.msra.mxu0 0.0
        %437 = vmatprep.subr.mxu0 0.0
        %438 = vmatpush1.msra.mxu0 0.0
        %439 = vmatprep.subr.mxu0 0.0
        %440 = vmatpush1.msra.mxu0 0.0
        %441 = vmatprep.subr.mxu0 0.0
        %442 = vmatpush1.msra.mxu0 0.0
        %443 = vmatprep.subr.mxu0 0.0
        %444 = vmatpush1.msra.mxu0 0.0
        %445 = vmatprep.subr.mxu0 0.0
        %446 = vmatpush1.msra.mxu0 0.0
        %447 = vmatprep.subr.mxu0 0.0
        %448 = vmatpush1.msra.mxu0 0.0
        %449 = vmatprep.subr.mxu0 0.0
        %450 = vmatpush1.msra.mxu0 0.0
        %451 = vmatprep.subr.mxu0 0.0
        %452 = vmatpush1.msra.mxu0 0.0
        %453 = vmatprep.subr.mxu0 0.0
        %454 = vmatpush1.msra.mxu0 0.0
        %455 = vmatprep.subr.mxu0 0.0
        %456 = vmatpush1.msra.mxu0 0.0
        %457 = vmatprep.subr.mxu0 0.0
        %458 = vmatpush1.msra.mxu0 0.0
        %459 = vmatprep.subr.mxu0 0.0
        %460 = vmatpush1.msra.mxu0 0.0
        %461 = vmatprep.subr.mxu0 0.0
        %462 = vmatpush1.msra.mxu0 0.0
        %463 = vmatprep.mubr.f32.mxu0 0.0
        %464 = vmatmul.mubr.f32.gmra.mrb[0].mxu0 %v394
        %v465 = vpop.f32.mrb[0].mxu0
        %v466 = vadd.f32 0.0, %v465
        %v467 = vpop.f32.mrb[0].mxu0
        %468 = vmatprep.mubr.f32.mxu0 0.0
        %469 = vmatmul.mubr.f32.gmra.mrb[0].mxu0 %v397
        %v470 = vpop.f32.mrb[0].mxu0
        %v471 = vadd.f32 0.0, %v470
        %v472 = vpop.f32.mrb[0].mxu0
        %473 = vdwg.mxu0
        %474 = vst.msk [vmem:[%s296] sm:$0xff] %vm307, %v466
        %475 = vst.msk [vmem:[%s296 + $0x8] sm:$0xff] %vm307, %v471
        %s476 = sand.u32 %s141, 1
        %s477 = scalar_lea.sflag [#allocation7], %s476
        %s478 = sand.u32 %s141, 1
        %s479 = smul.addr %s478, 16
        %s480 = scalar_lea.vmem [#allocation11], %s479
        // Predicated region
        $region45: #{tpu_custom_call.1} parent=31 // pred_check
          %p481 = pneg %p151
        $region46: #{tpu_custom_call.1} parent=31 // pred_check_branch
          %483 = sbr.rel (%p481) target = $region48
        $region47: #{tpu_custom_call.1} parent=31 // pred_region
          %s484 = sld [smem:[#allocation3 + %s35]]
          %s485 = smul.u32 2, %s36
          %s487 = ssub.s32 256, 256
          %488 = vsyncadd %s477, %s487
          %s489 = smul.addr %s484, 2
          %s490 = sadd.s32 %s485, %s489
          %s491 = smul.addr %s490, 128
          %s492 = scalar_lea.hbm %s5, %s491
          %s493 = sshll.u32 %s480, 4
          %s494 = int_to_ptr.vmem [resolvable:$true] %s493
          %499 = dma.vmem_to_hbm [thread:$0]  %s494, 256, %s492, %s477, 128, 128, 8
        $region48: #{tpu_custom_call.1} parent=31 // pred_fallthru
          _
      $region32: #{tpu_custom_call.1} parent=5 // pred_fallthru
        _
      %p500 = scmp.le.s32.totalorder 2, %s26
      // Predicated region
      $region49: #{tpu_custom_call.1} parent=5 // pred_check
        %p501 = pneg %p500
      $region50: #{tpu_custom_call.1} parent=5 // pred_check_branch
        %503 = sbr.rel (%p501) target = $region52
      $region51: #{tpu_custom_call.1} parent=5 // pred_region
        %s504 = ssub.s32 %s26, 2
        // Predicated region
        $region53: #{tpu_custom_call.1} parent=51 // pred_check
          %p505 = pneg %p157
        $region54: #{tpu_custom_call.1} parent=51 // pred_check_branch
          %507 = sbr.rel (%p505) target = $region56
        $region55: #{tpu_custom_call.1} parent=51 // pred_region
          %s508 = sand.u32 %s142, 1
          %s509 = scalar_lea.sflag [#allocation7], %s508
          %s510 = sand.u32 %s142, 1
          %s511 = smul.addr %s510, 16
          %s512 = scalar_lea.vmem [#allocation11], %s511
          %513 = dma.done %s509, 256
        $region56: #{tpu_custom_call.1} parent=51 // pred_fallthru
          _
      $region52: #{tpu_custom_call.1} parent=5 // pred_fallthru
        _
    $region6: #{tpu_custom_call.1} parent=1 // loop_footer
      %s30 = sadd.s32 1, %s26
    $region7: #{tpu_custom_call.1} parent=1 // loop_footer_branch
      %25 = sbr.rel target = $region3
    $region8: #{tpu_custom_call.1} parent=1 // loop_exit
      _
    %514 = vsyncpa [#allocation6], 1
    %s515 = scalar_lea.sflag [#allocation6], 1
    %516 = vsyncpa %s515, 1
    %517 = vsyncpa [#allocation9], 1
    %s518 = scalar_lea.sflag [#allocation9], 1
    %519 = vsyncpa %s518, 1
    %520 = vsyncpa [#allocation7], 1
    %s521 = scalar_lea.sflag [#allocation7], 1
    %522 = vsyncpa %s521, 1

</llo_original>
